<compile_context>
chip_gen: v6e
topology: v6e:2x2x1
jax: 0.10.0
libtpu: 0.0.40
codegen_flags: <defaults>
</compile_context>

<pallas_src>
import jax
import jax.numpy as jnp
from jax.experimental import pallas as pl
from jax.experimental.pallas import tpu as pltpu


def _gemv_kernel(x_ref, w_ref, b_ref, o_ref):
    # Single fused affine map: (bm, D) @ (D, 1) + (1, 1), f32 accumulate on the MXU.
    o_ref[...] = (
        jnp.dot(x_ref[...], w_ref[...], preferred_element_type=jnp.float32)
        + b_ref[...]
    ).astype(o_ref.dtype)


def _round_up(n, m):
    return ((n + m - 1) // m) * m


def compose_affine(params):
    """Fold Linear -> Dropout(eval) -> ... -> Linear into one exact affine map.

    params: list of (W_i, b_i) with W_i (in, out), b_i (1, out).
    Returns (W_eff (D, 1), b_eff (1, 1)) in float32.
    """
    w_eff, b_eff = params[0]
    w_eff = w_eff.astype(jnp.float32)
    b_eff = b_eff.astype(jnp.float32)
    for w, b in params[1:]:
        b_eff = b_eff @ w + b
        w_eff = w_eff @ w
    return w_eff, b_eff


def mlp_forward(x, params, *, bm=256):
    """x: (B, D) float32.  params: list of (W_i, b_i) with W_i (in, out), b_i (1, out)."""
    B, D = x.shape
    w_eff, b_eff = compose_affine(params)  # (D, 1), (1, 1)

    # Batch tile: large enough to fill the MXU / amortize grid-step overhead,
    # but clamped (and the batch zero-padded) so tiny batches still work.
    bm = max(8, min(bm, _round_up(B, 8)))
    Bp = _round_up(B, bm)
    if Bp != B:
        x = jnp.pad(x, ((0, Bp - B), (0, 0)))

    out = pl.pallas_call(
        _gemv_kernel,
        out_shape=jax.ShapeDtypeStruct((Bp, 1), x.dtype),
        grid_spec=pltpu.PrefetchScalarGridSpec(
            num_scalar_prefetch=0,
            grid=(Bp // bm,),
            in_specs=[
                pl.BlockSpec((bm, D), lambda i: (i, 0)),   # x: tiled over batch
                pl.BlockSpec((D, 1), lambda i: (0, 0)),    # W_eff: resident
                pl.BlockSpec((1, 1), lambda i: (0, 0)),    # b_eff: resident
            ],
            out_specs=pl.BlockSpec((bm, 1), lambda i: (i, 0)),
        ),
        compiler_params=pltpu.CompilerParams(
            dimension_semantics=("parallel",),  # batch steps shard across TCs (v7x)
        ),
    )(x, w_eff, b_eff)

    return out[:B]


def init_params(key, input_size):
    """Deterministic synthetic weights with the exact shapes of the PyTorch module."""
    dims = [input_size, 1024, 128, 64, 16, 1]
    params = []
    for li in range(len(dims) - 1):
        d_in, d_out = dims[li], dims[li + 1]
        key, wk, bk = jax.random.split(key, 3)
        scale = 1.0 / jnp.sqrt(jnp.float32(d_in))
        w = jax.random.normal(wk, (d_in, d_out), dtype=jnp.float32) * scale
        b = jax.random.normal(bk, (1, d_out), dtype=jnp.float32) * 0.01
        params.append((w, b))
    return params


def mlp_reference(x, params):
    # Layer-by-layer forward, exactly as the PyTorch module (eval mode).
    h = x
    for w, b in params:
        h = h @ w + b
    return h


if __name__ == "__main__":
    key = jax.random.PRNGKey(0)
    key, xk1, xk2 = jax.random.split(key, 3)

    D = 768  # aesthetic scorer uses a CLIP embedding (input_size=768)
    params = init_params(key, D)

    # Small batch (exercises the clamp/pad path, single grid step).
    B_small = 8
    x_small = jax.random.normal(xk1, (B_small, D), dtype=jnp.float32)
    out_small = jax.block_until_ready(mlp_forward(x_small, params))
    ref_small = mlp_reference(x_small, params)
    assert out_small.shape == (B_small, 1), out_small.shape
    assert jnp.allclose(out_small, ref_small, atol=1e-3, rtol=1e-3), (
        f"max abs err {jnp.max(jnp.abs(out_small - ref_small))}")

    # Larger batch (exercises bm=256 tiling and a >=2-step parallel grid).
    B_big = 512
    x_big = jax.random.normal(xk2, (B_big, D), dtype=jnp.float32)
    out_big = jax.block_until_ready(mlp_forward(x_big, params))
    ref_big = mlp_reference(x_big, params)
    assert out_big.shape == (B_big, 1), out_big.shape
    assert jnp.allclose(out_big, ref_big, atol=1e-3, rtol=1e-3), (
        f"max abs err {jnp.max(jnp.abs(out_big - ref_big))}")

    print("KERNEL_OK")
</pallas_src>

<mosaic_0001>
module attributes {stable_mosaic.version = 11 : i64} {
  func.func @_gemv_kernel(%arg0: i32, %arg1: memref<8x768xf32, #tpu.memory_space<vmem>>, %arg2: memref<768x1xf32, #tpu.memory_space<vmem>>, %arg3: memref<1x1xf32, #tpu.memory_space<vmem>>, %arg4: memref<8x1xf32, #tpu.memory_space<vmem>>) attributes {dimension_semantics = [#tpu.dimension_semantics<parallel>], iteration_bounds = array<i64: 1>, scalar_prefetch = 0 : i64, scratch_operands = 0 : i64, tpu.core_type = #tpu.core_type<tc>, window_params = [{transform_indices = @transform_0, window_bounds = array<i64: 8, 768>}, {pipeline_mode = #tpu.pipeline_mode<synchronous>, transform_indices = @transform_1, window_bounds = array<i64: 768, 1>}, {pipeline_mode = #tpu.pipeline_mode<synchronous>, transform_indices = @transform_2, window_bounds = array<i64: 1, 1>}, {transform_indices = @transform_3, window_bounds = array<i64: 8, 1>}]} {
    %c0 = arith.constant 0 : index
    %c0_0 = arith.constant 0 : index
    %0 = vector.load %arg1[%c0, %c0_0] : memref<8x768xf32, #tpu.memory_space<vmem>>, vector<8x768xf32>
    %c0_1 = arith.constant 0 : index
    %c0_2 = arith.constant 0 : index
    %1 = vector.load %arg2[%c0_1, %c0_2] : memref<768x1xf32, #tpu.memory_space<vmem>>, vector<768x1xf32>
    %cst = arith.constant dense<0.000000e+00> : vector<8x1xf32>
    %2 = tpu.matmul %0, %1, %cst {dimension_numbers = #tpu.dot_dimension_numbers<[1], [0], [0], [1], [0, 0, 1, 1], [], []>} : vector<8x768xf32>, vector<768x1xf32>, vector<8x1xf32> -> vector<8x1xf32>
    %c0_3 = arith.constant 0 : index
    %c0_4 = arith.constant 0 : index
    %3 = vector.load %arg3[%c0_3, %c0_4] : memref<1x1xf32, #tpu.memory_space<vmem>>, vector<1x1xf32>
    %4 = vector.broadcast %3 : vector<1x1xf32> to vector<8x1xf32>
    %5 = arith.addf %2, %4 : vector<8x1xf32>
    %c0_5 = arith.constant 0 : index
    %c0_6 = arith.constant 0 : index
    %6 = vector.load %arg4[%c0_5, %c0_6] : memref<8x1xf32, #tpu.memory_space<vmem>>, vector<8x1xf32>
    tpu.vector_store %arg4[%c0_5, %c0_6], %5 {strides = array<i32>} : memref<8x1xf32, #tpu.memory_space<vmem>>, vector<8x1xf32>,
    return
  }
  func.func @transform_0(%arg0: i32) -> (i32, i32) {
    %c0_i32 = arith.constant 0 : i32
    %c0_i32_0 = arith.constant 0 : i32
    return %arg0, %c0_i32 : i32, i32
  }
  func.func @transform_1(%arg0: i32) -> (i32, i32) {
    %c0_i32 = arith.constant 0 : i32
    %c0_i32_0 = arith.constant 0 : i32
    %c0_i32_1 = arith.constant 0 : i32
    return %c0_i32, %c0_i32_0 : i32, i32
  }
  func.func @transform_2(%arg0: i32) -> (i32, i32) {
    %c0_i32 = arith.constant 0 : i32
    %c0_i32_0 = arith.constant 0 : i32
    %c0_i32_1 = arith.constant 0 : i32
    return %c0_i32, %c0_i32_0 : i32, i32
  }
  func.func @transform_3(%arg0: i32) -> (i32, i32) {
    %c0_i32 = arith.constant 0 : i32
    %c0_i32_0 = arith.constant 0 : i32
    return %arg0, %c0_i32 : i32, i32
  }
}

</mosaic_0001>

<llo_original>
// kernel: tpu_custom_call.1
$region0: #{tpu_custom_call.1}
  #allocation0 [shape = 'u32[]', space=smem, size = 0x4, offset = 0x4, fixed_abs, tag = 'smem constant byte address 0x4 - core index']
  #allocation1 [shape = 'u32[144,128]{1,0:T(1,128)}', space=vmem, size = 0x12000, scoped, tag = 'internal scratch']
  #allocation2 [shape = 'f32[1,1]{1,0:T(1,128)S(1)}', space=vmem, size = 0x200, scoped, tag = 'scoped memory for tpu_custom_call.1']
  %s0 = inlined_call_operand.vmem [shape: f32[8,768], index: 0, kind: input, shape index: {}]
  %s1 = inlined_call_operand.vmem [shape: f32[768,1], index: 1, kind: input, shape index: {}]
  %s2 = inlined_call_operand.<no memory space> [shape: f32[1,1], index: 2, kind: input, shape index: {}]
  %s3 = inlined_call_operand.vmem [shape: f32[8,1], index: 3, kind: output, shape index: {}]
  %s4 = sld [smem:[#allocation0]]
  $region22: #{tpu_custom_call.1} parent=0
    _
  %s6 = ssub.s32 1, %s4
  %s7 = scalar_select 0, %s6, %s4
  %v8 = vstv %s2
  %9 = vst [vmem:[#allocation2] sm:$0x1] %v8
  // Predicated region
  $region2: #{tpu_custom_call.1} parent=0 // pred_check
    _
  $region3: #{tpu_custom_call.1} parent=0 // pred_check_branch
    %11 = sbr.rel (0) target = $region5
  $region4: #{tpu_custom_call.1} parent=0 // pred_region
    _
  $region5: #{tpu_custom_call.1} parent=0 // pred_fallthru
    _
  // Predicated region
  $region6: #{tpu_custom_call.1} parent=0 // pred_check
    _
  $region7: #{tpu_custom_call.1} parent=0 // pred_check_branch
    %13 = sbr.rel (0) target = $region9
  $region8: #{tpu_custom_call.1} parent=0 // pred_region
    _
  $region9: #{tpu_custom_call.1} parent=0 // pred_fallthru
    _
  // Predicated region
  $region10: #{tpu_custom_call.1} parent=0 // pred_check
    _
  $region11: #{tpu_custom_call.1} parent=0 // pred_check_branch
    %15 = sbr.rel (0) target = $region13
  $region12: #{tpu_custom_call.1} parent=0 // pred_region
    _
  $region13: #{tpu_custom_call.1} parent=0 // pred_fallthru
    _
  %v16 = vld [vmem:[%s0] sm:$0xff]
  %v17 = vld [vmem:[%s0 + $0x8] sm:$0xff]
  %v18 = vld [vmem:[%s0 + $0x10] sm:$0xff]
  %v19 = vld [vmem:[%s0 + $0x18] sm:$0xff]
  %v20 = vld [vmem:[%s0 + $0x20] sm:$0xff]
  %v21 = vld [vmem:[%s0 + $0x28] sm:$0xff]
  %v22 = vld [vmem:[%s1] sm:$0xff]
  %v23 = vld [vmem:[%s1 + $0x8] sm:$0xff]
  %v24 = vld [vmem:[%s1 + $0x10] sm:$0xff]
  %v25 = vld [vmem:[%s1 + $0x18] sm:$0xff]
  %v26 = vld [vmem:[%s1 + $0x20] sm:$0xff]
  %v27 = vld [vmem:[%s1 + $0x28] sm:$0xff]
  %v28 = vld [vmem:[%s1 + $0x30] sm:$0xff]
  %v29 = vld [vmem:[%s1 + $0x38] sm:$0xff]
  %v30 = vld [vmem:[%s1 + $0x40] sm:$0xff]
  %v31 = vld [vmem:[%s1 + $0x48] sm:$0xff]
  %v32 = vld [vmem:[%s1 + $0x50] sm:$0xff]
  %v33 = vld [vmem:[%s1 + $0x58] sm:$0xff]
  %v34 = vld [vmem:[%s1 + $0x60] sm:$0xff]
  %v35 = vld [vmem:[%s1 + $0x68] sm:$0xff]
  %v36 = vld [vmem:[%s1 + $0x70] sm:$0xff]
  %v37 = vld [vmem:[%s1 + $0x78] sm:$0xff]
  %v38 = vld [vmem:[%s1 + $0x80] sm:$0xff]
  %v39 = vld [vmem:[%s1 + $0x88] sm:$0xff]
  %v40 = vld [vmem:[%s1 + $0x90] sm:$0xff]
  %v41 = vld [vmem:[%s1 + $0x98] sm:$0xff]
  %v42 = vld [vmem:[%s1 + $0xa0] sm:$0xff]
  %v43 = vld [vmem:[%s1 + $0xa8] sm:$0xff]
  %v44 = vld [vmem:[%s1 + $0xb0] sm:$0xff]
  %v45 = vld [vmem:[%s1 + $0xb8] sm:$0xff]
  %v46 = vld [vmem:[%s1 + $0xc0] sm:$0xff]
  %v47 = vld [vmem:[%s1 + $0xc8] sm:$0xff]
  %v48 = vld [vmem:[%s1 + $0xd0] sm:$0xff]
  %v49 = vld [vmem:[%s1 + $0xd8] sm:$0xff]
  %v50 = vld [vmem:[%s1 + $0xe0] sm:$0xff]
  %v51 = vld [vmem:[%s1 + $0xe8] sm:$0xff]
  %v52 = vld [vmem:[%s1 + $0xf0] sm:$0xff]
  %v53 = vld [vmem:[%s1 + $0xf8] sm:$0xff]
  %v54 = vld [vmem:[%s1 + $0x100] sm:$0xff]
  %v55 = vld [vmem:[%s1 + $0x108] sm:$0xff]
  %v56 = vld [vmem:[%s1 + $0x110] sm:$0xff]
  %v57 = vld [vmem:[%s1 + $0x118] sm:$0xff]
  %v58 = vld [vmem:[%s1 + $0x120] sm:$0xff]
  %v59 = vld [vmem:[%s1 + $0x128] sm:$0xff]
  %v60 = vld [vmem:[%s1 + $0x130] sm:$0xff]
  %v61 = vld [vmem:[%s1 + $0x138] sm:$0xff]
  %v62 = vld [vmem:[%s1 + $0x140] sm:$0xff]
  %v63 = vld [vmem:[%s1 + $0x148] sm:$0xff]
  %v64 = vld [vmem:[%s1 + $0x150] sm:$0xff]
  %v65 = vld [vmem:[%s1 + $0x158] sm:$0xff]
  %v66 = vld [vmem:[%s1 + $0x160] sm:$0xff]
  %v67 = vld [vmem:[%s1 + $0x168] sm:$0xff]
  %v68 = vld [vmem:[%s1 + $0x170] sm:$0xff]
  %v69 = vld [vmem:[%s1 + $0x178] sm:$0xff]
  %v70 = vld [vmem:[%s1 + $0x180] sm:$0xff]
  %v71 = vld [vmem:[%s1 + $0x188] sm:$0xff]
  %v72 = vld [vmem:[%s1 + $0x190] sm:$0xff]
  %v73 = vld [vmem:[%s1 + $0x198] sm:$0xff]
  %v74 = vld [vmem:[%s1 + $0x1a0] sm:$0xff]
  %v75 = vld [vmem:[%s1 + $0x1a8] sm:$0xff]
  %v76 = vld [vmem:[%s1 + $0x1b0] sm:$0xff]
  %v77 = vld [vmem:[%s1 + $0x1b8] sm:$0xff]
  %v78 = vld [vmem:[%s1 + $0x1c0] sm:$0xff]
  %v79 = vld [vmem:[%s1 + $0x1c8] sm:$0xff]
  %v80 = vld [vmem:[%s1 + $0x1d0] sm:$0xff]
  %v81 = vld [vmem:[%s1 + $0x1d8] sm:$0xff]
  %v82 = vld [vmem:[%s1 + $0x1e0] sm:$0xff]
  %v83 = vld [vmem:[%s1 + $0x1e8] sm:$0xff]
  %v84 = vld [vmem:[%s1 + $0x1f0] sm:$0xff]
  %v85 = vld [vmem:[%s1 + $0x1f8] sm:$0xff]
  %v86 = vld [vmem:[%s1 + $0x200] sm:$0xff]
  %v87 = vld [vmem:[%s1 + $0x208] sm:$0xff]
  %v88 = vld [vmem:[%s1 + $0x210] sm:$0xff]
  %v89 = vld [vmem:[%s1 + $0x218] sm:$0xff]
  %v90 = vld [vmem:[%s1 + $0x220] sm:$0xff]
  %v91 = vld [vmem:[%s1 + $0x228] sm:$0xff]
  %v92 = vld [vmem:[%s1 + $0x230] sm:$0xff]
  %v93 = vld [vmem:[%s1 + $0x238] sm:$0xff]
  %v94 = vld [vmem:[%s1 + $0x240] sm:$0xff]
  %v95 = vld [vmem:[%s1 + $0x248] sm:$0xff]
  %v96 = vld [vmem:[%s1 + $0x250] sm:$0xff]
  %v97 = vld [vmem:[%s1 + $0x258] sm:$0xff]
  %v98 = vld [vmem:[%s1 + $0x260] sm:$0xff]
  %v99 = vld [vmem:[%s1 + $0x268] sm:$0xff]
  %v100 = vld [vmem:[%s1 + $0x270] sm:$0xff]
  %v101 = vld [vmem:[%s1 + $0x278] sm:$0xff]
  %v102 = vld [vmem:[%s1 + $0x280] sm:$0xff]
  %v103 = vld [vmem:[%s1 + $0x288] sm:$0xff]
  %v104 = vld [vmem:[%s1 + $0x290] sm:$0xff]
  %v105 = vld [vmem:[%s1 + $0x298] sm:$0xff]
  %v106 = vld [vmem:[%s1 + $0x2a0] sm:$0xff]
  %v107 = vld [vmem:[%s1 + $0x2a8] sm:$0xff]
  %v108 = vld [vmem:[%s1 + $0x2b0] sm:$0xff]
  %v109 = vld [vmem:[%s1 + $0x2b8] sm:$0xff]
  %v110 = vld [vmem:[%s1 + $0x2c0] sm:$0xff]
  %v111 = vld [vmem:[%s1 + $0x2c8] sm:$0xff]
  %v112 = vld [vmem:[%s1 + $0x2d0] sm:$0xff]
  %v113 = vld [vmem:[%s1 + $0x2d8] sm:$0xff]
  %v114 = vld [vmem:[%s1 + $0x2e0] sm:$0xff]
  %v115 = vld [vmem:[%s1 + $0x2e8] sm:$0xff]
  %v116 = vld [vmem:[%s1 + $0x2f0] sm:$0xff]
  %v117 = vld [vmem:[%s1 + $0x2f8] sm:$0xff]
  %v118 = vld [vmem:[#allocation2] sm:$0x1]
  %v120 = vlaneseq
  %v121 = vshrl.u32 %v120, 7
  %v122 = vsub.s32 0, %v121
  %v123 = vrot.slane %v118, %v122
  %125 = vmatprep.subr.mxu0 0.0
  %126 = vmatpush1.msra.mxu0 %v37
  %127 = vmatprep.subr.mxu0 0.0
  %128 = vmatpush1.msra.mxu0 %v36
  %129 = vmatprep.subr.mxu0 0.0
  %130 = vmatpush1.msra.mxu0 %v35
  %131 = vmatprep.subr.mxu0 0.0
  %132 = vmatpush1.msra.mxu0 %v34
  %133 = vmatprep.subr.mxu0 0.0
  %134 = vmatpush1.msra.mxu0 %v33
  %135 = vmatprep.subr.mxu0 0.0
  %136 = vmatpush1.msra.mxu0 %v32
  %137 = vmatprep.subr.mxu0 0.0
  %138 = vmatpush1.msra.mxu0 %v31
  %139 = vmatprep.subr.mxu0 0.0
  %140 = vmatpush1.msra.mxu0 %v30
  %141 = vmatprep.subr.mxu0 0.0
  %142 = vmatpush1.msra.mxu0 %v29
  %143 = vmatprep.subr.mxu0 0.0
  %144 = vmatpush1.msra.mxu0 %v28
  %145 = vmatprep.subr.mxu0 0.0
  %146 = vmatpush1.msra.mxu0 %v27
  %147 = vmatprep.subr.mxu0 0.0
  %148 = vmatpush1.msra.mxu0 %v26
  %149 = vmatprep.subr.mxu0 0.0
  %150 = vmatpush1.msra.mxu0 %v25
  %151 = vmatprep.subr.mxu0 0.0
  %152 = vmatpush1.msra.mxu0 %v24
  %153 = vmatprep.subr.mxu0 0.0
  %154 = vmatpush1.msra.mxu0 %v23
  %155 = vmatprep.subr.mxu0 0.0
  %156 = vmatpush1.msra.mxu0 %v22
  %157 = vmatprep.subr.mxu0 0.0
  %158 = vmatpush2.msra.mxu0 %v53
  %159 = vmatprep.subr.mxu0 0.0
  %160 = vmatpush2.msra.mxu0 %v52
  %161 = vmatprep.subr.mxu0 0.0
  %162 = vmatpush2.msra.mxu0 %v51
  %163 = vmatprep.subr.mxu0 0.0
  %164 = vmatpush2.msra.mxu0 %v50
  %165 = vmatprep.subr.mxu0 0.0
  %166 = vmatpush2.msra.mxu0 %v49
  %167 = vmatprep.subr.mxu0 0.0
  %168 = vmatpush2.msra.mxu0 %v48
  %169 = vmatprep.subr.mxu0 0.0
  %170 = vmatpush2.msra.mxu0 %v47
  %171 = vmatprep.subr.mxu0 0.0
  %172 = vmatpush2.msra.mxu0 %v46
  %173 = vmatprep.subr.mxu0 0.0
  %174 = vmatpush2.msra.mxu0 %v45
  %175 = vmatprep.subr.mxu0 0.0
  %176 = vmatpush2.msra.mxu0 %v44
  %177 = vmatprep.subr.mxu0 0.0
  %178 = vmatpush2.msra.mxu0 %v43
  %179 = vmatprep.subr.mxu0 0.0
  %180 = vmatpush2.msra.mxu0 %v42
  %181 = vmatprep.subr.mxu0 0.0
  %182 = vmatpush2.msra.mxu0 %v41
  %183 = vmatprep.subr.mxu0 0.0
  %184 = vmatpush2.msra.mxu0 %v40
  %185 = vmatprep.subr.mxu0 0.0
  %186 = vmatpush2.msra.mxu0 %v39
  %187 = vmatprep.subr.mxu0 0.0
  %188 = vmatpush2.msra.mxu0 %v38
  %189 = vmatprep.mubr.f32.mxu0 %v17
  %190 = vmatmul.mubr.f32.gmra.mxu0 %v16
  %v191 = vpop.f32.mrf.mxu0
  %v192 = vadd.f32 %v123, %v191
  %v193 = vpop.f32.mrf.mxu0
  %194 = vdwg.mxu0
  %195 = vmatprep.subr.mxu0 0.0
  %196 = vmatpush1.msra.mxu0 %v69
  %197 = vmatprep.subr.mxu0 0.0
  %198 = vmatpush1.msra.mxu0 %v68
  %199 = vmatprep.subr.mxu0 0.0
  %200 = vmatpush1.msra.mxu0 %v67
  %201 = vmatprep.subr.mxu0 0.0
  %202 = vmatpush1.msra.mxu0 %v66
  %203 = vmatprep.subr.mxu0 0.0
  %204 = vmatpush1.msra.mxu0 %v65
  %205 = vmatprep.subr.mxu0 0.0
  %206 = vmatpush1.msra.mxu0 %v64
  %207 = vmatprep.subr.mxu0 0.0
  %208 = vmatpush1.msra.mxu0 %v63
  %209 = vmatprep.subr.mxu0 0.0
  %210 = vmatpush1.msra.mxu0 %v62
  %211 = vmatprep.subr.mxu0 0.0
  %212 = vmatpush1.msra.mxu0 %v61
  %213 = vmatprep.subr.mxu0 0.0
  %214 = vmatpush1.msra.mxu0 %v60
  %215 = vmatprep.subr.mxu0 0.0
  %216 = vmatpush1.msra.mxu0 %v59
  %217 = vmatprep.subr.mxu0 0.0
  %218 = vmatpush1.msra.mxu0 %v58
  %219 = vmatprep.subr.mxu0 0.0
  %220 = vmatpush1.msra.mxu0 %v57
  %221 = vmatprep.subr.mxu0 0.0
  %222 = vmatpush1.msra.mxu0 %v56
  %223 = vmatprep.subr.mxu0 0.0
  %224 = vmatpush1.msra.mxu0 %v55
  %225 = vmatprep.subr.mxu0 0.0
  %226 = vmatpush1.msra.mxu0 %v54
  %227 = vmatprep.subr.mxu0 0.0
  %228 = vmatpush2.msra.mxu0 %v85
  %229 = vmatprep.subr.mxu0 0.0
  %230 = vmatpush2.msra.mxu0 %v84
  %231 = vmatprep.subr.mxu0 0.0
  %232 = vmatpush2.msra.mxu0 %v83
  %233 = vmatprep.subr.mxu0 0.0
  %234 = vmatpush2.msra.mxu0 %v82
  %235 = vmatprep.subr.mxu0 0.0
  %236 = vmatpush2.msra.mxu0 %v81
  %237 = vmatprep.subr.mxu0 0.0
  %238 = vmatpush2.msra.mxu0 %v80
  %239 = vmatprep.subr.mxu0 0.0
  %240 = vmatpush2.msra.mxu0 %v79
  %241 = vmatprep.subr.mxu0 0.0
  %242 = vmatpush2.msra.mxu0 %v78
  %243 = vmatprep.subr.mxu0 0.0
  %244 = vmatpush2.msra.mxu0 %v77
  %245 = vmatprep.subr.mxu0 0.0
  %246 = vmatpush2.msra.mxu0 %v76
  %247 = vmatprep.subr.mxu0 0.0
  %248 = vmatpush2.msra.mxu0 %v75
  %249 = vmatprep.subr.mxu0 0.0
  %250 = vmatpush2.msra.mxu0 %v74
  %251 = vmatprep.subr.mxu0 0.0
  %252 = vmatpush2.msra.mxu0 %v73
  %253 = vmatprep.subr.mxu0 0.0
  %254 = vmatpush2.msra.mxu0 %v72
  %255 = vmatprep.subr.mxu0 0.0
  %256 = vmatpush2.msra.mxu0 %v71
  %257 = vmatprep.subr.mxu0 0.0
  %258 = vmatpush2.msra.mxu0 %v70
  %259 = vmatprep.mubr.f32.mxu0 %v19
  %260 = vmatmul.mubr.f32.gmra.mxu0 %v18
  %v261 = vpop.f32.mrf.mxu0
  %v262 = vadd.f32 %v192, %v261
  %v263 = vpop.f32.mrf.mxu0
  %264 = vdwg.mxu0
  %265 = vmatprep.subr.mxu0 0.0
  %266 = vmatpush1.msra.mxu0 %v101
  %267 = vmatprep.subr.mxu0 0.0
  %268 = vmatpush1.msra.mxu0 %v100
  %269 = vmatprep.subr.mxu0 0.0
  %270 = vmatpush1.msra.mxu0 %v99
  %271 = vmatprep.subr.mxu0 0.0
  %272 = vmatpush1.msra.mxu0 %v98
  %273 = vmatprep.subr.mxu0 0.0
  %274 = vmatpush1.msra.mxu0 %v97
  %275 = vmatprep.subr.mxu0 0.0
  %276 = vmatpush1.msra.mxu0 %v96
  %277 = vmatprep.subr.mxu0 0.0
  %278 = vmatpush1.msra.mxu0 %v95
  %279 = vmatprep.subr.mxu0 0.0
  %280 = vmatpush1.msra.mxu0 %v94
  %281 = vmatprep.subr.mxu0 0.0
  %282 = vmatpush1.msra.mxu0 %v93
  %283 = vmatprep.subr.mxu0 0.0
  %284 = vmatpush1.msra.mxu0 %v92
  %285 = vmatprep.subr.mxu0 0.0
  %286 = vmatpush1.msra.mxu0 %v91
  %287 = vmatprep.subr.mxu0 0.0
  %288 = vmatpush1.msra.mxu0 %v90
  %289 = vmatprep.subr.mxu0 0.0
  %290 = vmatpush1.msra.mxu0 %v89
  %291 = vmatprep.subr.mxu0 0.0
  %292 = vmatpush1.msra.mxu0 %v88
  %293 = vmatprep.subr.mxu0 0.0
  %294 = vmatpush1.msra.mxu0 %v87
  %295 = vmatprep.subr.mxu0 0.0
  %296 = vmatpush1.msra.mxu0 %v86
  %297 = vmatprep.subr.mxu0 0.0
  %298 = vmatpush2.msra.mxu0 %v117
  %299 = vmatprep.subr.mxu0 0.0
  %300 = vmatpush2.msra.mxu0 %v116
  %301 = vmatprep.subr.mxu0 0.0
  %302 = vmatpush2.msra.mxu0 %v115
  %303 = vmatprep.subr.mxu0 0.0
  %304 = vmatpush2.msra.mxu0 %v114
  %305 = vmatprep.subr.mxu0 0.0
  %306 = vmatpush2.msra.mxu0 %v113
  %307 = vmatprep.subr.mxu0 0.0
  %308 = vmatpush2.msra.mxu0 %v112
  %309 = vmatprep.subr.mxu0 0.0
  %310 = vmatpush2.msra.mxu0 %v111
  %311 = vmatprep.subr.mxu0 0.0
  %312 = vmatpush2.msra.mxu0 %v110
  %313 = vmatprep.subr.mxu0 0.0
  %314 = vmatpush2.msra.mxu0 %v109
  %315 = vmatprep.subr.mxu0 0.0
  %316 = vmatpush2.msra.mxu0 %v108
  %317 = vmatprep.subr.mxu0 0.0
  %318 = vmatpush2.msra.mxu0 %v107
  %319 = vmatprep.subr.mxu0 0.0
  %320 = vmatpush2.msra.mxu0 %v106
  %321 = vmatprep.subr.mxu0 0.0
  %322 = vmatpush2.msra.mxu0 %v105
  %323 = vmatprep.subr.mxu0 0.0
  %324 = vmatpush2.msra.mxu0 %v104
  %325 = vmatprep.subr.mxu0 0.0
  %326 = vmatpush2.msra.mxu0 %v103
  %327 = vmatprep.subr.mxu0 0.0
  %328 = vmatpush2.msra.mxu0 %v102
  %329 = vmatprep.mubr.f32.mxu0 %v21
  %330 = vmatmul.mubr.f32.gmra.mxu0 %v20
  %v331 = vpop.f32.mrf.mxu0
  %v332 = vadd.f32 %v262, %v331
  %v333 = vpop.f32.mrf.mxu0
  %334 = vdwg.mxu0
  %vm335 = vcmask 7168
  %336 = vst.msk [vmem:[%s3] sm:$0xff] %vm335, %v332
  // Predicated region
  $region14: #{tpu_custom_call.1} parent=0 // pred_check
    _
  $region15: #{tpu_custom_call.1} parent=0 // pred_check_branch
    %338 = sbr.rel (0) target = $region17
  $region16: #{tpu_custom_call.1} parent=0 // pred_region
    _
  $region17: #{tpu_custom_call.1} parent=0 // pred_fallthru
    _
  // Predicated region
  $region18: #{tpu_custom_call.1} parent=0 // pred_check
    _
  $region19: #{tpu_custom_call.1} parent=0 // pred_check_branch
    %340 = sbr.rel (0) target = $region21
  $region20: #{tpu_custom_call.1} parent=0 // pred_region
    _
  $region21: #{tpu_custom_call.1} parent=0 // pred_fallthru
    _

</llo_original>
